<compile_context>
chip_gen: v5e
topology: v5e:2x2
jax: 0.10.0
libtpu: 0.0.40
codegen_flags: <defaults>
</compile_context>

<pallas_src>
import functools
import math

import jax
import jax.numpy as jnp
import numpy as np
from jax import lax
from jax.experimental import pallas as pl
from jax.experimental.pallas import tpu as pltpu


def _attention_kernel(ht_ref, hs_ref, wa_ref, wc1_ref, wc2_ref, b_ref,
                      o_ref, acc_ref, *, G, H, O_pad, q_side, dot_dtype):
    """One grid step processes a group of G batch elements.

    Refs:
      ht_ref : (Tq, G*H)      hs_ref : (Ts, G*H)
      wa_ref : (H, H)         (holds W_a^T when q_side=True)
      wc1_ref, wc2_ref : (H, O_pad)   (zero-padded columns beyond O)
      b_ref  : (1, G*O_pad)   (bias tiled per batch, zeros in pad lanes)
      o_ref  : (Tq, G*O_pad)
      acc_ref: (Tq, G*O_pad)  f32 VMEM scratch (pre-activation accumulator)
    """
    wa = wa_ref[...]
    wc1 = wc1_ref[...]
    wc2 = wc2_ref[...]

    # G is a small static Python int; each batch element is a static H-wide
    # lane slice of the fused block.  Partial outputs go straight into the
    # scratch slice (no concat, bounded live ranges); bias + tanh are applied
    # once on the assembled block at the end.
    for g in range(G):
        ht_g = ht_ref[:, g * H:(g + 1) * H].astype(dot_dtype)   # (Tq, H)
        hs_g = hs_ref[:, g * H:(g + 1) * H].astype(dot_dtype)   # (Ts, H)

        if q_side:
            # Decode-style case (Ts > Tq): project the QUERY through W_a
            # (wa holds W_a^T) -> Tq*H^2 FLOPs instead of Ts*H^2, and the
            # projection no longer sits on the hs critical path.
            q = jnp.dot(ht_g, wa, preferred_element_type=jnp.float32)
            scores = lax.dot_general(
                q.astype(dot_dtype), hs_g,
                dimension_numbers=(((1,), (1,)), ((), ())),
                preferred_element_type=jnp.float32)              # (Tq, Ts)
        else:
            # Ts <= Tq (and the parity path for the test): keep the reference
            # contraction order s1 = hs @ W_a, scores = ht . s1 (contract the
            # LAST dims of both operands; no materialized transpose).
            s1 = jnp.dot(hs_g, wa, preferred_element_type=jnp.float32)
            scores = lax.dot_general(
                ht_g, s1.astype(dot_dtype),
                dimension_numbers=(((1,), (1,)), ((), ())),
                preferred_element_type=jnp.float32)              # (Tq, Ts)

        # Numerically stable softmax over the source axis.  EXACT divide --
        # the previous approximate reciprocal was the tolerance failure.
        scores = scores - jnp.max(scores, axis=-1, keepdims=True)
        e = jnp.exp(scores)
        a = e / jnp.sum(e, axis=-1, keepdims=True)
        # TODO(synk): optional `source` pad-mask (zero masked scores); only
        # the PyTorch source=None path is implemented here.

        # context c[j, h] = sum_l a[j, l] * hs[l, h]              -> (Tq, H)
        c = jnp.dot(a.astype(dot_dtype), hs_g, preferred_element_type=jnp.float32)

        # concat(c, ht) @ W_c == c @ W_c[:H] + ht @ W_c[H:]
        out_g = (jnp.dot(c.astype(dot_dtype), wc1, preferred_element_type=jnp.float32)
                 + jnp.dot(ht_g, wc2, preferred_element_type=jnp.float32))
        acc_ref[:, g * O_pad:(g + 1) * O_pad] = out_g

    # Bias + tanh applied once on the whole block; single lane-dense store.
    o_ref[...] = jnp.tanh(acc_ref[...] + b_ref[...]).astype(o_ref.dtype)


def _pick_group(Tq, Ts, B, H, O, itemsize=4,
                vmem_budget_bytes=16 * 1024 * 1024):
    """Largest proper divisor g of B whose fused lane widths are 128-aligned
    and whose double-buffered block footprint fits a conservative VMEM budget
    (16 MiB = v5e scoped default, well under v7x's 64 MiB physical).  Any
    g < B gives NG = B // g >= 2 grid steps, so the 'parallel' grid axis can
    shard across both v7x TensorCores.  Fall back to g = B (one full-width
    step) when no aligned divisor exists (e.g. the tiny test shapes)."""
    def fits(g):
        blk = (Tq + Ts) * g * H + 2 * Tq * g * O    # input blocks + out + scratch
        return 2 * blk * itemsize <= vmem_budget_bytes
    aligned = [g for g in range(1, B) if B % g == 0
               and (g * H) % 128 == 0 and (g * O) % 128 == 0 and fits(g)]
    return max(aligned) if aligned else B


def attention_forward(ht, hs, W_a, W_c, b):
    """ht: (Tq, B, H), hs: (Ts, B, H), W_a: (H, H), W_c: (2H, O), b: (O,)."""
    Tq, B, H = ht.shape
    Ts = hs.shape[0]
    O = W_c.shape[1]
    in_dtype = ht.dtype

    # bf16 MXU operands (f32 accumulation) once H is MXU-sized (v6e/v7x);
    # tiny H keeps the input dtype so numerics match the reference exactly
    # and v5e (no bf16 VPU/EUP) keeps its elementwise math in f32.
    dot_dtype = jnp.bfloat16 if (H >= 128 and in_dtype == jnp.float32) else in_dtype

    G = _pick_group(Tq, Ts, B, H, O)
    NG = B // G

    # Pad the per-batch output width so the fused output lane width is a
    # multiple of 128 (unmasked stores).  Only when the group block spans the
    # full array width (NG == 1) and the padding overhead is at most 2x.
    O_pad = O
    if NG == 1 and (G * O) % 128 != 0:
        unit = 128 // math.gcd(128, G)
        cand = ((O + unit - 1) // unit) * unit
        if cand <= 2 * O:
            O_pad = cand

    q_side = Ts > Tq                      # project the shorter side through W_a
    wa_arg = (W_a.T if q_side else W_a).astype(dot_dtype)

    wc1 = W_c[:H, :]                      # applied to the context c
    wc2 = W_c[H:, :]                      # applied to ht
    b_p = b
    if O_pad != O:
        wc1 = jnp.pad(wc1, ((0, 0), (0, O_pad - O)))
        wc2 = jnp.pad(wc2, ((0, 0), (0, O_pad - O)))
        b_p = jnp.pad(b, (0, O_pad - O))
    wc1 = wc1.astype(dot_dtype)
    wc2 = wc2.astype(dot_dtype)
    bias_tiled = jnp.tile(b_p.astype(jnp.float32).reshape(1, O_pad), (1, B))

    # Free reshapes (contiguous trailing-dim merges) -- no HBM transpose pass.
    ht2 = ht.reshape(Tq, B * H)
    hs2 = hs.reshape(Ts, B * H)

    kernel = functools.partial(_attention_kernel, G=G, H=H, O_pad=O_pad,
                               q_side=q_side, dot_dtype=dot_dtype)

    out2 = pl.pallas_call(
        kernel,
        out_shape=jax.ShapeDtypeStruct((Tq, B * O_pad), in_dtype),
        grid=(NG,),
        in_specs=[
            pl.BlockSpec((Tq, G * H), lambda i: (0, i)),
            pl.BlockSpec((Ts, G * H), lambda i: (0, i)),
            pl.BlockSpec((H, H), lambda i: (0, 0)),
            pl.BlockSpec((H, O_pad), lambda i: (0, 0)),
            pl.BlockSpec((H, O_pad), lambda i: (0, 0)),
            pl.BlockSpec((1, G * O_pad), lambda i: (0, i)),
        ],
        out_specs=pl.BlockSpec((Tq, G * O_pad), lambda i: (0, i)),
        scratch_shapes=[pltpu.VMEM((Tq, G * O_pad), jnp.float32)],
        compiler_params=pltpu.CompilerParams(
            dimension_semantics=("parallel",),
            vmem_limit_bytes=32 * 1024 * 1024),
    )(ht2, hs2, wa_arg, wc1, wc2, bias_tiled)

    out = out2.reshape(Tq, B, O_pad)
    if O_pad != O:
        out = out[..., :O]                # drop the lane padding
    return out


def reference_forward(ht, hs, W_a, W_c, b):
    score = jnp.einsum('jik,kl->jil', hs, W_a)
    score = jnp.einsum('jik,lik->jil', ht, score)
    score = score - jnp.max(score, axis=-1, keepdims=True)
    score = jnp.exp(score)
    a = score / jnp.sum(score, axis=-1, keepdims=True)
    c = jnp.einsum('jik,kil->jil', a, hs)
    h = jnp.concatenate((c, ht), axis=-1)
    return jnp.tanh(jnp.einsum('jik,kl->jil', h, W_c) + b)


if __name__ == "__main__":
    # Small deterministic config
    Tq, Ts, B = 8, 8, 2          # target seq, source seq, batch
    hidden_dim, output_dim = 32, 32

    key = jax.random.PRNGKey(0)
    k_ht, k_hs, k_wa, k_wc = jax.random.split(key, 4)

    ht = jax.random.normal(k_ht, (Tq, B, hidden_dim), dtype=jnp.float32)
    hs = jax.random.normal(k_hs, (Ts, B, hidden_dim), dtype=jnp.float32)

    # xavier_normal_ init: std = sqrt(2 / (fan_in + fan_out))
    std_wa = float(np.sqrt(2.0 / (hidden_dim + hidden_dim)))
    std_wc = float(np.sqrt(2.0 / (2 * hidden_dim + output_dim)))
    W_a = jax.random.normal(k_wa, (hidden_dim, hidden_dim), dtype=jnp.float32) * std_wa
    W_c = jax.random.normal(k_wc, (2 * hidden_dim, output_dim), dtype=jnp.float32) * std_wc
    b = jnp.zeros((output_dim,), dtype=jnp.float32)

    out = jax.jit(attention_forward)(ht, hs, W_a, W_c, b)
    out = jax.block_until_ready(out)

    ref = reference_forward(ht, hs, W_a, W_c, b)
    # Softmax now uses an exact divide (the approximate reciprocal caused the
    # previous 4.6e-3 mismatch), so a tighter tolerance holds.
    np.testing.assert_allclose(np.asarray(out), np.asarray(ref),
                               rtol=1e-3, atol=1e-3)

    print("KERNEL_OK")
</pallas_src>

<mosaic_0001>
module attributes {stable_mosaic.version = 11 : i64} {
  func.func @_attention_kernel(%arg0: i32, %arg1: memref<8x64xf32, #tpu.memory_space<vmem>>, %arg2: memref<8x64xf32, #tpu.memory_space<vmem>>, %arg3: memref<32x32xf32, #tpu.memory_space<vmem>>, %arg4: memref<32x64xf32, #tpu.memory_space<vmem>>, %arg5: memref<32x64xf32, #tpu.memory_space<vmem>>, %arg6: memref<1x128xf32, #tpu.memory_space<vmem>>, %arg7: memref<8x128xf32, #tpu.memory_space<vmem>>, %arg8: memref<8x128xf32, #tpu.memory_space<vmem>>) attributes {dimension_semantics = [#tpu.dimension_semantics<parallel>], iteration_bounds = array<i64: 1>, scalar_prefetch = 0 : i64, scratch_operands = 1 : i64, tpu.core_type = #tpu.core_type<tc>, window_params = [{transform_indices = @transform_0, window_bounds = array<i64: 8, 64>}, {transform_indices = @transform_1, window_bounds = array<i64: 8, 64>}, {pipeline_mode = #tpu.pipeline_mode<synchronous>, transform_indices = @transform_2, window_bounds = array<i64: 32, 32>}, {pipeline_mode = #tpu.pipeline_mode<synchronous>, transform_indices = @transform_3, window_bounds = array<i64: 32, 64>}, {pipeline_mode = #tpu.pipeline_mode<synchronous>, transform_indices = @transform_4, window_bounds = array<i64: 32, 64>}, {transform_indices = @transform_5, window_bounds = array<i64: 1, 128>}, {transform_indices = @transform_6, window_bounds = array<i64: 8, 128>}]} {
    %c0 = arith.constant 0 : index
    %c0_0 = arith.constant 0 : index
    %0 = vector.load %arg3[%c0, %c0_0] : memref<32x32xf32, #tpu.memory_space<vmem>>, vector<32x32xf32>
    %c0_1 = arith.constant 0 : index
    %c0_2 = arith.constant 0 : index
    %1 = vector.load %arg4[%c0_1, %c0_2] : memref<32x64xf32, #tpu.memory_space<vmem>>, vector<32x64xf32>
    %c0_3 = arith.constant 0 : index
    %c0_4 = arith.constant 0 : index
    %2 = vector.load %arg5[%c0_3, %c0_4] : memref<32x64xf32, #tpu.memory_space<vmem>>, vector<32x64xf32>
    %c0_5 = arith.constant 0 : index
    %c0_6 = arith.constant 0 : index
    %3 = vector.load %arg1[%c0_5, %c0_6] : memref<8x64xf32, #tpu.memory_space<vmem>>, vector<8x32xf32>
    %c0_7 = arith.constant 0 : index
    %c0_8 = arith.constant 0 : index
    %4 = vector.load %arg2[%c0_7, %c0_8] : memref<8x64xf32, #tpu.memory_space<vmem>>, vector<8x32xf32>
    %cst = arith.constant dense<0.000000e+00> : vector<8x32xf32>
    %5 = tpu.matmul %4, %0, %cst {dimension_numbers = #tpu.dot_dimension_numbers<[1], [0], [0], [1], [0, 0, 1, 1], [], []>} : vector<8x32xf32>, vector<32x32xf32>, vector<8x32xf32> -> vector<8x32xf32>
    %cst_9 = arith.constant dense<0.000000e+00> : vector<8x8xf32>
    %6 = tpu.matmul %3, %5, %cst_9 {dimension_numbers = #tpu.dot_dimension_numbers<[1], [1], [0], [0], [0, 0, 1, 0], [], []>} : vector<8x32xf32>, vector<8x32xf32>, vector<8x8xf32> -> vector<8x8xf32>
    %cst_10 = arith.constant dense<0xFF800000> : vector<8xf32>
    %7 = vector.multi_reduction <maximumf>, %6, %cst_10 [1] : vector<8x8xf32> to vector<8xf32>
    %8 = vector.shape_cast %7 : vector<8xf32> to vector<8x1xf32>
    %9 = vector.broadcast %8 : vector<8x1xf32> to vector<8x8xf32>
    %10 = arith.subf %6, %9 : vector<8x8xf32>
    %11 = math.exp %10 : vector<8x8xf32>
    %cst_11 = arith.constant dense<0.000000e+00> : vector<8xf32>
    %12 = vector.multi_reduction <add>, %11, %cst_11 [1] : vector<8x8xf32> to vector<8xf32>
    %13 = vector.shape_cast %12 : vector<8xf32> to vector<8x1xf32>
    %14 = vector.broadcast %13 : vector<8x1xf32> to vector<8x8xf32>
    %15 = arith.divf %11, %14 : vector<8x8xf32>
    %cst_12 = arith.constant dense<0.000000e+00> : vector<8x32xf32>
    %16 = tpu.matmul %15, %4, %cst_12 {dimension_numbers = #tpu.dot_dimension_numbers<[1], [0], [0], [1], [0, 0, 1, 1], [], []>} : vector<8x8xf32>, vector<8x32xf32>, vector<8x32xf32> -> vector<8x32xf32>
    %cst_13 = arith.constant dense<0.000000e+00> : vector<8x64xf32>
    %17 = tpu.matmul %16, %1, %cst_13 {dimension_numbers = #tpu.dot_dimension_numbers<[1], [0], [0], [1], [0, 0, 1, 1], [], []>} : vector<8x32xf32>, vector<32x64xf32>, vector<8x64xf32> -> vector<8x64xf32>
    %cst_14 = arith.constant dense<0.000000e+00> : vector<8x64xf32>
    %18 = tpu.matmul %3, %2, %cst_14 {dimension_numbers = #tpu.dot_dimension_numbers<[1], [0], [0], [1], [0, 0, 1, 1], [], []>} : vector<8x32xf32>, vector<32x64xf32>, vector<8x64xf32> -> vector<8x64xf32>
    %19 = arith.addf %17, %18 : vector<8x64xf32>
    %c0_15 = arith.constant 0 : index
    %c0_16 = arith.constant 0 : index
    %20 = vector.load %arg8[%c0_15, %c0_16] : memref<8x128xf32, #tpu.memory_space<vmem>>, vector<8x64xf32>
    tpu.vector_store %arg8[%c0_15, %c0_16], %19 {strides = array<i32>} : memref<8x128xf32, #tpu.memory_space<vmem>>, vector<8x64xf32>,
    %c0_17 = arith.constant 0 : index
    %c32 = arith.constant 32 : index
    %21 = vector.load %arg1[%c0_17, %c32] : memref<8x64xf32, #tpu.memory_space<vmem>>, vector<8x32xf32>
    %c0_18 = arith.constant 0 : index
    %c32_19 = arith.constant 32 : index
    %22 = vector.load %arg2[%c0_18, %c32_19] : memref<8x64xf32, #tpu.memory_space<vmem>>, vector<8x32xf32>
    %cst_20 = arith.constant dense<0.000000e+00> : vector<8x32xf32>
    %23 = tpu.matmul %22, %0, %cst_20 {dimension_numbers = #tpu.dot_dimension_numbers<[1], [0], [0], [1], [0, 0, 1, 1], [], []>} : vector<8x32xf32>, vector<32x32xf32>, vector<8x32xf32> -> vector<8x32xf32>
    %cst_21 = arith.constant dense<0.000000e+00> : vector<8x8xf32>
    %24 = tpu.matmul %21, %23, %cst_21 {dimension_numbers = #tpu.dot_dimension_numbers<[1], [1], [0], [0], [0, 0, 1, 0], [], []>} : vector<8x32xf32>, vector<8x32xf32>, vector<8x8xf32> -> vector<8x8xf32>
    %cst_22 = arith.constant dense<0xFF800000> : vector<8xf32>
    %25 = vector.multi_reduction <maximumf>, %24, %cst_22 [1] : vector<8x8xf32> to vector<8xf32>
    %26 = vector.shape_cast %25 : vector<8xf32> to vector<8x1xf32>
    %27 = vector.broadcast %26 : vector<8x1xf32> to vector<8x8xf32>
    %28 = arith.subf %24, %27 : vector<8x8xf32>
    %29 = math.exp %28 : vector<8x8xf32>
    %cst_23 = arith.constant dense<0.000000e+00> : vector<8xf32>
    %30 = vector.multi_reduction <add>, %29, %cst_23 [1] : vector<8x8xf32> to vector<8xf32>
    %31 = vector.shape_cast %30 : vector<8xf32> to vector<8x1xf32>
    %32 = vector.broadcast %31 : vector<8x1xf32> to vector<8x8xf32>
    %33 = arith.divf %29, %32 : vector<8x8xf32>
    %cst_24 = arith.constant dense<0.000000e+00> : vector<8x32xf32>
    %34 = tpu.matmul %33, %22, %cst_24 {dimension_numbers = #tpu.dot_dimension_numbers<[1], [0], [0], [1], [0, 0, 1, 1], [], []>} : vector<8x8xf32>, vector<8x32xf32>, vector<8x32xf32> -> vector<8x32xf32>
    %cst_25 = arith.constant dense<0.000000e+00> : vector<8x64xf32>
    %35 = tpu.matmul %34, %1, %cst_25 {dimension_numbers = #tpu.dot_dimension_numbers<[1], [0], [0], [1], [0, 0, 1, 1], [], []>} : vector<8x32xf32>, vector<32x64xf32>, vector<8x64xf32> -> vector<8x64xf32>
    %cst_26 = arith.constant dense<0.000000e+00> : vector<8x64xf32>
    %36 = tpu.matmul %21, %2, %cst_26 {dimension_numbers = #tpu.dot_dimension_numbers<[1], [0], [0], [1], [0, 0, 1, 1], [], []>} : vector<8x32xf32>, vector<32x64xf32>, vector<8x64xf32> -> vector<8x64xf32>
    %37 = arith.addf %35, %36 : vector<8x64xf32>
    %c0_27 = arith.constant 0 : index
    %c64 = arith.constant 64 : index
    %38 = vector.load %arg8[%c0_27, %c64] : memref<8x128xf32, #tpu.memory_space<vmem>>, vector<8x64xf32>
    tpu.vector_store %arg8[%c0_27, %c64], %37 {strides = array<i32>} : memref<8x128xf32, #tpu.memory_space<vmem>>, vector<8x64xf32>,
    %c0_28 = arith.constant 0 : index
    %c0_29 = arith.constant 0 : index
    %39 = vector.load %arg8[%c0_28, %c0_29] : memref<8x128xf32, #tpu.memory_space<vmem>>, vector<8x128xf32>
    %c0_30 = arith.constant 0 : index
    %c0_31 = arith.constant 0 : index
    %40 = vector.load %arg6[%c0_30, %c0_31] : memref<1x128xf32, #tpu.memory_space<vmem>>, vector<1x128xf32>
    %41 = vector.broadcast %40 : vector<1x128xf32> to vector<8x128xf32>
    %42 = arith.addf %39, %41 : vector<8x128xf32>
    %43 = math.tanh %42 : vector<8x128xf32>
    %c0_32 = arith.constant 0 : index
    %c0_33 = arith.constant 0 : index
    %44 = vector.load %arg7[%c0_32, %c0_33] : memref<8x128xf32, #tpu.memory_space<vmem>>, vector<8x128xf32>
    tpu.vector_store %arg7[%c0_32, %c0_33], %43 {strides = array<i32>} : memref<8x128xf32, #tpu.memory_space<vmem>>, vector<8x128xf32>,
    return
  }
  func.func @transform_0(%arg0: i32) -> (i32, i32) {
    %c0_i32 = arith.constant 0 : i32
    %c0_i32_0 = arith.constant 0 : i32
    return %c0_i32, %arg0 : i32, i32
  }
  func.func @transform_1(%arg0: i32) -> (i32, i32) {
    %c0_i32 = arith.constant 0 : i32
    %c0_i32_0 = arith.constant 0 : i32
    return %c0_i32, %arg0 : i32, i32
  }
  func.func @transform_2(%arg0: i32) -> (i32, i32) {
    %c0_i32 = arith.constant 0 : i32
    %c0_i32_0 = arith.constant 0 : i32
    %c0_i32_1 = arith.constant 0 : i32
    return %c0_i32, %c0_i32_0 : i32, i32
  }
  func.func @transform_3(%arg0: i32) -> (i32, i32) {
    %c0_i32 = arith.constant 0 : i32
    %c0_i32_0 = arith.constant 0 : i32
    %c0_i32_1 = arith.constant 0 : i32
    return %c0_i32, %c0_i32_0 : i32, i32
  }
  func.func @transform_4(%arg0: i32) -> (i32, i32) {
    %c0_i32 = arith.constant 0 : i32
    %c0_i32_0 = arith.constant 0 : i32
    %c0_i32_1 = arith.constant 0 : i32
    return %c0_i32, %c0_i32_0 : i32, i32
  }
  func.func @transform_5(%arg0: i32) -> (i32, i32) {
    %c0_i32 = arith.constant 0 : i32
    %c0_i32_0 = arith.constant 0 : i32
    return %c0_i32, %arg0 : i32, i32
  }
  func.func @transform_6(%arg0: i32) -> (i32, i32) {
    %c0_i32 = arith.constant 0 : i32
    %c0_i32_0 = arith.constant 0 : i32
    return %c0_i32, %arg0 : i32, i32
  }
}

</mosaic_0001>

<llo_original>
// kernel: attention_forward.1
$region0: #{attention_forward.1}
  #allocation0 [shape = 'u32[]', space=smem, size = 0x4, offset = 0x4, fixed_abs, tag = 'smem constant byte address 0x4 - core index']
  #allocation1 [shape = 'u32[72,128]{1,0:T(1,128)}', space=vmem, size = 0x9000, scoped, tag = 'internal scratch']
  #allocation2 [shape = 'f32[8,128]{1,0:T(8,128)}', space=vmem, size = 0x1000, scoped, tag = 'scratch operand']
  %s0 = inlined_call_operand.vmem [shape: f32[8,64], index: 0, kind: input, shape index: {}]
  %s1 = inlined_call_operand.vmem [shape: f32[8,64], index: 1, kind: input, shape index: {}]
  %s2 = inlined_call_operand.vmem [shape: f32[32,32], index: 2, kind: input, shape index: {}]
  %s3 = inlined_call_operand.vmem [shape: f32[32,64], index: 3, kind: input, shape index: {}]
  %s4 = inlined_call_operand.vmem [shape: f32[32,64], index: 4, kind: input, shape index: {}]
  %s5 = inlined_call_operand.vmem [shape: f32[1,128], index: 5, kind: input, shape index: {}]
  %s6 = inlined_call_operand.vmem [shape: f32[8,128], index: 6, kind: output, shape index: {}]
  %s7 = sld [smem:[#allocation0]]
  $region34: #{attention_forward.1} parent=0
    _
  %s9 = ssub.s32 1, %s7
  %s10 = scalar_select 0, %s9, %s7
  // Predicated region
  $region2: #{attention_forward.1} parent=0 // pred_check
    _
  $region3: #{attention_forward.1} parent=0 // pred_check_branch
    %12 = sbr.rel (0) target = $region5
  $region4: #{attention_forward.1} parent=0 // pred_region
    _
  $region5: #{attention_forward.1} parent=0 // pred_fallthru
    _
  // Predicated region
  $region6: #{attention_forward.1} parent=0 // pred_check
    _
  $region7: #{attention_forward.1} parent=0 // pred_check_branch
    %14 = sbr.rel (0) target = $region9
  $region8: #{attention_forward.1} parent=0 // pred_region
    _
  $region9: #{attention_forward.1} parent=0 // pred_fallthru
    _
  // Predicated region
  $region10: #{attention_forward.1} parent=0 // pred_check
    _
  $region11: #{attention_forward.1} parent=0 // pred_check_branch
    %16 = sbr.rel (0) target = $region13
  $region12: #{attention_forward.1} parent=0 // pred_region
    _
  $region13: #{attention_forward.1} parent=0 // pred_fallthru
    _
  // Predicated region
  $region14: #{attention_forward.1} parent=0 // pred_check
    _
  $region15: #{attention_forward.1} parent=0 // pred_check_branch
    %18 = sbr.rel (0) target = $region17
  $region16: #{attention_forward.1} parent=0 // pred_region
    _
  $region17: #{attention_forward.1} parent=0 // pred_fallthru
    _
  // Predicated region
  $region18: #{attention_forward.1} parent=0 // pred_check
    _
  $region19: #{attention_forward.1} parent=0 // pred_check_branch
    %20 = sbr.rel (0) target = $region21
  $region20: #{attention_forward.1} parent=0 // pred_region
    _
  $region21: #{attention_forward.1} parent=0 // pred_fallthru
    _
  // Predicated region
  $region22: #{attention_forward.1} parent=0 // pred_check
    _
  $region23: #{attention_forward.1} parent=0 // pred_check_branch
    %22 = sbr.rel (0) target = $region25
  $region24: #{attention_forward.1} parent=0 // pred_region
    _
  $region25: #{attention_forward.1} parent=0 // pred_fallthru
    _
  %v23 = vld [vmem:[%s2] sm:$0xff]
  %v24 = vld [vmem:[%s2 + $0x8] sm:$0xff]
  %v25 = vld [vmem:[%s2 + $0x10] sm:$0xff]
  %v26 = vld [vmem:[%s2 + $0x18] sm:$0xff]
  %v27 = vld [vmem:[%s3] sm:$0xff]
  %v28 = vld [vmem:[%s3 + $0x8] sm:$0xff]
  %v29 = vld [vmem:[%s3 + $0x10] sm:$0xff]
  %v30 = vld [vmem:[%s3 + $0x18] sm:$0xff]
  %v31 = vld [vmem:[%s4] sm:$0xff]
  %v32 = vld [vmem:[%s4 + $0x8] sm:$0xff]
  %v33 = vld [vmem:[%s4 + $0x10] sm:$0xff]
  %v34 = vld [vmem:[%s4 + $0x18] sm:$0xff]
  %v35 = vld [vmem:[%s0] sm:$0xff]
  %v36 = vld [vmem:[%s1] sm:$0xff]
  %vm37 = vcmask 261120
  %v39 = vsel %vm37, %v36, 0
  %41 = vmatpush.msra.mxu0 0.0
  %42 = vmatpush.msra.mxu0 0.0
  %43 = vmatpush.msra.mxu0 0.0
  %44 = vmatpush.msra.mxu0 0.0
  %45 = vmatpush.msra.mxu0 0.0
  %46 = vmatpush.msra.mxu0 0.0
  %47 = vmatpush.msra.mxu0 0.0
  %48 = vmatpush.msra.mxu0 0.0
  %49 = vmatpush.msra.mxu0 0.0
  %50 = vmatpush.msra.mxu0 0.0
  %51 = vmatpush.msra.mxu0 0.0
  %52 = vmatpush.msra.mxu0 0.0
  %53 = vmatpush.msra.mxu0 %v26
  %54 = vmatpush.msra.mxu0 %v25
  %55 = vmatpush.msra.mxu0 %v24
  %56 = vmatpush.msra.mxu0 %v23
  %57 = vmatmul.f32.gmra.mxu0 %v39
  %v58 = vpop.f32.mrf.mxu0
  %v59 = vadd.f32 0.0, %v58
  %60 = vdwg.mxu0
  %v62 = vsel %vm37, %v35, 0
  %v65 = vsel %vm37, %v59, 0
  %67 = vmatpush.xpose.msra.mxu0 0.0
  %68 = vmatpush.xpose.msra.mxu0 0.0
  %69 = vmatpush.xpose.msra.mxu0 0.0
  %70 = vmatpush.xpose.msra.mxu0 0.0
  %71 = vmatpush.xpose.msra.mxu0 0.0
  %72 = vmatpush.xpose.msra.mxu0 0.0
  %73 = vmatpush.xpose.msra.mxu0 0.0
  %74 = vmatpush.xpose.msra.mxu0 0.0
  %75 = vmatpush.xpose.msra.mxu0 0.0
  %76 = vmatpush.xpose.msra.mxu0 0.0
  %77 = vmatpush.xpose.msra.mxu0 0.0
  %78 = vmatpush.xpose.msra.mxu0 0.0
  %79 = vmatpush.xpose.msra.mxu0 0.0
  %80 = vmatpush.xpose.msra.mxu0 0.0
  %81 = vmatpush.xpose.msra.mxu0 0.0
  %82 = vmatpush.xpose.msra.mxu0 %v65
  %83 = vmatmul.f32.gmra.mxu0 %v62
  %v84 = vpop.f32.mrf.mxu0
  %v85 = vadd.f32 0.0, %v84
  %86 = vdwg.mxu0
  %vm87 = vcmask 64512
  %v88 = vsel %vm87, %v85, -inf
  %89 = vmax.xlane.f32.xlu0 %v88
  %v90 = vpop.xlane.xlu0 %89
  %v91 = vsub.f32 %v85, %v90
  %v92 = vmul.f32 %v91, 1.442695
  %v93 = vpow.pop %v92
  %v94 = vsel %vm87, %v93, 0.0
  %95 = vadd.xlane.f32.xlu0 %v94
  %v96 = vpop.xlane.xlu0 %95
  %v97 = vrcp.pop %v96
  %v98 = vmul.f32 %v96, %v97
  %v99 = vsub.f32 1.0, %v98
  %v100 = vmul.f32 %v97, %v99
  %v101 = vadd.f32 %v97, %v100
  %vm102 = vweird.f32 %v96
  %vm103 = vweird.f32 %v97
  %vm104 = vmor %vm102, %vm103
  %v105 = vsel %vm104, %v97, %v101
  %v106 = vand.u32 2147483647, %v96
  %vm107 = vcmp.eq.f32.partialorder %v106, 8.507059e+37
  %v108 = vand.u32 %v96, 2147483648
  %v109 = vor.u32 1.1754944e-38, %v108
  %v110 = vsel %vm107, %v109, %v105
  %v111 = vmul.f32 %v93, %v110
  %v113 = vsel %vm87, %v111, 0
  %115 = vmatpush.msra.mxu0 0.0
  %116 = vmatpush.msra.mxu0 0.0
  %117 = vmatpush.msra.mxu0 0.0
  %118 = vmatpush.msra.mxu0 0.0
  %119 = vmatpush.msra.mxu0 0.0
  %120 = vmatpush.msra.mxu0 0.0
  %121 = vmatpush.msra.mxu0 0.0
  %122 = vmatpush.msra.mxu0 0.0
  %123 = vmatpush.msra.mxu0 0.0
  %124 = vmatpush.msra.mxu0 0.0
  %125 = vmatpush.msra.mxu0 0.0
  %126 = vmatpush.msra.mxu0 0.0
  %127 = vmatpush.msra.mxu0 0.0
  %128 = vmatpush.msra.mxu0 0.0
  %129 = vmatpush.msra.mxu0 0.0
  %130 = vmatpush.msra.mxu0 %v36
  %131 = vmatmul.f32.gmra.mxu0 %v113
  %v132 = vpop.f32.mrf.mxu0
  %v133 = vadd.f32 0.0, %v132
  %134 = vdwg.mxu0
  %135 = vmatpush.msra.mxu0 0.0
  %136 = vmatpush.msra.mxu0 0.0
  %137 = vmatpush.msra.mxu0 0.0
  %138 = vmatpush.msra.mxu0 0.0
  %139 = vmatpush.msra.mxu0 0.0
  %140 = vmatpush.msra.mxu0 0.0
  %141 = vmatpush.msra.mxu0 0.0
  %142 = vmatpush.msra.mxu0 0.0
  %143 = vmatpush.msra.mxu0 0.0
  %144 = vmatpush.msra.mxu0 0.0
  %145 = vmatpush.msra.mxu0 0.0
  %146 = vmatpush.msra.mxu0 0.0
  %147 = vmatpush.msra.mxu0 %v34
  %148 = vmatpush.msra.mxu0 %v33
  %149 = vmatpush.msra.mxu0 %v32
  %150 = vmatpush.msra.mxu0 %v31
  %151 = vmatmul.f32.gmra.mxu0 %v62
  %v152 = vpop.f32.mrf.mxu0
  %v153 = vadd.f32 0.0, %v152
  %154 = vdwg.mxu0
  %v156 = vsel %vm37, %v133, 0
  %158 = vmatpush.msra.mxu0 0.0
  %159 = vmatpush.msra.mxu0 0.0
  %160 = vmatpush.msra.mxu0 0.0
  %161 = vmatpush.msra.mxu0 0.0
  %162 = vmatpush.msra.mxu0 0.0
  %163 = vmatpush.msra.mxu0 0.0
  %164 = vmatpush.msra.mxu0 0.0
  %165 = vmatpush.msra.mxu0 0.0
  %166 = vmatpush.msra.mxu0 0.0
  %167 = vmatpush.msra.mxu0 0.0
  %168 = vmatpush.msra.mxu0 0.0
  %169 = vmatpush.msra.mxu0 0.0
  %170 = vmatpush.msra.mxu0 %v30
  %171 = vmatpush.msra.mxu0 %v29
  %172 = vmatpush.msra.mxu0 %v28
  %173 = vmatpush.msra.mxu0 %v27
  %174 = vmatmul.f32.gmra.mxu0 %v156
  %v175 = vpop.f32.mrf.mxu0
  %v176 = vadd.f32 %v153, %v175
  %177 = vdwg.mxu0
  %vm178 = vcmask 523264
  %179 = vst.msk [vmem:[#allocation2] sm:$0xff] %vm178, %v176
  %v180 = vld [vmem:[%s0] sm:$0xff]
  %v181 = vld [vmem:[%s1] sm:$0xff]
  %183 = vrot.lane.b32.xlu0 %v181, 96
  %v184 = vpop.permute.xlu0 %183
  %v185 = vsel %vm37, %v184, 0
  %187 = vmatpush.msra.mxu0 0.0
  %188 = vmatpush.msra.mxu0 0.0
  %189 = vmatpush.msra.mxu0 0.0
  %190 = vmatpush.msra.mxu0 0.0
  %191 = vmatpush.msra.mxu0 0.0
  %192 = vmatpush.msra.mxu0 0.0
  %193 = vmatpush.msra.mxu0 0.0
  %194 = vmatpush.msra.mxu0 0.0
  %195 = vmatpush.msra.mxu0 0.0
  %196 = vmatpush.msra.mxu0 0.0
  %197 = vmatpush.msra.mxu0 0.0
  %198 = vmatpush.msra.mxu0 0.0
  %199 = vmatpush.msra.mxu0 %v26
  %200 = vmatpush.msra.mxu0 %v25
  %201 = vmatpush.msra.mxu0 %v24
  %202 = vmatpush.msra.mxu0 %v23
  %203 = vmatmul.f32.gmra.mxu0 %v185
  %v204 = vpop.f32.mrf.mxu0
  %v205 = vadd.f32 0.0, %v204
  %206 = vdwg.mxu0
  %208 = vrot.lane.b32.xlu0 %v180, 96
  %v209 = vpop.permute.xlu0 %208
  %v210 = vsel %vm37, %v209, 0
  %v213 = vsel %vm37, %v205, 0
  %215 = vmatpush.xpose.msra.mxu0 0.0
  %216 = vmatpush.xpose.msra.mxu0 0.0
  %217 = vmatpush.xpose.msra.mxu0 0.0
  %218 = vmatpush.xpose.msra.mxu0 0.0
  %219 = vmatpush.xpose.msra.mxu0 0.0
  %220 = vmatpush.xpose.msra.mxu0 0.0
  %221 = vmatpush.xpose.msra.mxu0 0.0
  %222 = vmatpush.xpose.msra.mxu0 0.0
  %223 = vmatpush.xpose.msra.mxu0 0.0
  %224 = vmatpush.xpose.msra.mxu0 0.0
  %225 = vmatpush.xpose.msra.mxu0 0.0
  %226 = vmatpush.xpose.msra.mxu0 0.0
  %227 = vmatpush.xpose.msra.mxu0 0.0
  %228 = vmatpush.xpose.msra.mxu0 0.0
  %229 = vmatpush.xpose.msra.mxu0 0.0
  %230 = vmatpush.xpose.msra.mxu0 %v213
  %231 = vmatmul.f32.gmra.mxu0 %v210
  %v232 = vpop.f32.mrf.mxu0
  %v233 = vadd.f32 0.0, %v232
  %234 = vdwg.mxu0
  %v235 = vsel %vm87, %v233, -inf
  %236 = vmax.xlane.f32.xlu0 %v235
  %v237 = vpop.xlane.xlu0 %236
  %v238 = vsub.f32 %v233, %v237
  %v239 = vmul.f32 %v238, 1.442695
  %v240 = vpow.pop %v239
  %v241 = vsel %vm87, %v240, 0.0
  %242 = vadd.xlane.f32.xlu0 %v241
  %v243 = vpop.xlane.xlu0 %242
  %v244 = vrcp.pop %v243
  %v245 = vmul.f32 %v243, %v244
  %v246 = vsub.f32 1.0, %v245
  %v247 = vmul.f32 %v244, %v246
  %v248 = vadd.f32 %v244, %v247
  %vm249 = vweird.f32 %v243
  %vm250 = vweird.f32 %v244
  %vm251 = vmor %vm249, %vm250
  %v252 = vsel %vm251, %v244, %v248
  %v253 = vand.u32 2147483647, %v243
  %vm254 = vcmp.eq.f32.partialorder %v253, 8.507059e+37
  %v255 = vand.u32 %v243, 2147483648
  %v256 = vor.u32 1.1754944e-38, %v255
  %v257 = vsel %vm254, %v256, %v252
  %v258 = vmul.f32 %v240, %v257
  %v261 = vsel %vm87, %v258, 0
  %263 = vmatpush.msra.mxu0 0.0
  %264 = vmatpush.msra.mxu0 0.0
  %265 = vmatpush.msra.mxu0 0.0
  %266 = vmatpush.msra.mxu0 0.0
  %267 = vmatpush.msra.mxu0 0.0
  %268 = vmatpush.msra.mxu0 0.0
  %269 = vmatpush.msra.mxu0 0.0
  %270 = vmatpush.msra.mxu0 0.0
  %271 = vmatpush.msra.mxu0 0.0
  %272 = vmatpush.msra.mxu0 0.0
  %273 = vmatpush.msra.mxu0 0.0
  %274 = vmatpush.msra.mxu0 0.0
  %275 = vmatpush.msra.mxu0 0.0
  %276 = vmatpush.msra.mxu0 0.0
  %277 = vmatpush.msra.mxu0 0.0
  %278 = vmatpush.msra.mxu0 %v184
  %279 = vmatmul.f32.gmra.mxu0 %v261
  %v280 = vpop.f32.mrf.mxu0
  %v281 = vadd.f32 0.0, %v280
  %282 = vdwg.mxu0
  %283 = vmatpush.msra.mxu0 0.0
  %284 = vmatpush.msra.mxu0 0.0
  %285 = vmatpush.msra.mxu0 0.0
  %286 = vmatpush.msra.mxu0 0.0
  %287 = vmatpush.msra.mxu0 0.0
  %288 = vmatpush.msra.mxu0 0.0
  %289 = vmatpush.msra.mxu0 0.0
  %290 = vmatpush.msra.mxu0 0.0
  %291 = vmatpush.msra.mxu0 0.0
  %292 = vmatpush.msra.mxu0 0.0
  %293 = vmatpush.msra.mxu0 0.0
  %294 = vmatpush.msra.mxu0 0.0
  %295 = vmatpush.msra.mxu0 %v34
  %296 = vmatpush.msra.mxu0 %v33
  %297 = vmatpush.msra.mxu0 %v32
  %298 = vmatpush.msra.mxu0 %v31
  %299 = vmatmul.f32.gmra.mxu0 %v210
  %v300 = vpop.f32.mrf.mxu0
  %v301 = vadd.f32 0.0, %v300
  %302 = vdwg.mxu0
  %v304 = vsel %vm37, %v281, 0
  %306 = vmatpush.msra.mxu0 0.0
  %307 = vmatpush.msra.mxu0 0.0
  %308 = vmatpush.msra.mxu0 0.0
  %309 = vmatpush.msra.mxu0 0.0
  %310 = vmatpush.msra.mxu0 0.0
  %311 = vmatpush.msra.mxu0 0.0
  %312 = vmatpush.msra.mxu0 0.0
  %313 = vmatpush.msra.mxu0 0.0
  %314 = vmatpush.msra.mxu0 0.0
  %315 = vmatpush.msra.mxu0 0.0
  %316 = vmatpush.msra.mxu0 0.0
  %317 = vmatpush.msra.mxu0 0.0
  %318 = vmatpush.msra.mxu0 %v30
  %319 = vmatpush.msra.mxu0 %v29
  %320 = vmatpush.msra.mxu0 %v28
  %321 = vmatpush.msra.mxu0 %v27
  %322 = vmatmul.f32.gmra.mxu0 %v304
  %v323 = vpop.f32.mrf.mxu0
  %v324 = vadd.f32 %v301, %v323
  %325 = vdwg.mxu0
  %327 = vrot.lane.b32.xlu0 %v324, 64
  %v328 = vpop.permute.xlu0 %327
  %vm330 = vcmask 1048064
  %331 = vst.msk [vmem:[#allocation2] sm:$0xff] %vm330, %v328
  %v332 = vld [vmem:[#allocation2] sm:$0xff]
  %v333 = vld [vmem:[%s5] sm:$0x1]
  %v335 = vperm.slane %v333, 0
  %v337 = vadd.f32 %v332, %v335
  %v338 = vtanh.pop %v337
  %339 = vst [vmem:[%s6] sm:$0xff] %v338
  // Predicated region
  $region26: #{attention_forward.1} parent=0 // pred_check
    _
  $region27: #{attention_forward.1} parent=0 // pred_check_branch
    %341 = sbr.rel (0) target = $region29
  $region28: #{attention_forward.1} parent=0 // pred_region
    _
  $region29: #{attention_forward.1} parent=0 // pred_fallthru
    _
  // Predicated region
  $region30: #{attention_forward.1} parent=0 // pred_check
    _
  $region31: #{attention_forward.1} parent=0 // pred_check_branch
    %343 = sbr.rel (0) target = $region33
  $region32: #{attention_forward.1} parent=0 // pred_region
    _
  $region33: #{attention_forward.1} parent=0 // pred_fallthru
    _

</llo_original>
